<compile_context>
chip_gen: v7x
topology: tpu7x:2x2x1
jax: 0.10.0
libtpu: 0.0.40
codegen_flags: <defaults>
</compile_context>

<pallas_src>
import functools

import jax
import jax.numpy as jnp
from jax import lax
from jax.experimental import pallas as pl
from jax.experimental.pallas import tpu as pltpu

_LANE = 128          # TPU lane width
_SUBLANE_CAP = 512   # max sublane rows per block (multiple of 8 / 16 / 32)


def _round_down(x, m):
    return (x // m) * m


def _target_block_bytes():
    """(per-block byte budget, vmem_limit_bytes or None).

    ~2 MiB blocks are safe everywhere (v5e default scoped VMEM is 16 MiB and
    the pipeline footprint is ~8 MiB).  On v7x-class chips (<= 64 MiB VMEM,
    ~3.2 TB/s HBM) bigger blocks amortize the ~0.35 us/step overhead better,
    so use ~4 MiB blocks and raise the scoped VMEM limit.
    """
    try:
        vmem = int(getattr(pltpu.get_tpu_info(), "vmem_capacity_bytes", 0))
    except Exception:
        vmem = 0
    if 0 < vmem <= (64 << 20):
        return 4 << 20, 40 << 20
    return 2 << 20, None


def _clip_boxes_kernel(boxes_ref, out_ref, *, w_max, h_max):
    boxes = boxes_ref[...]                                   # (bm, bk)
    # Every lane block starts at a flat offset that is a multiple of 4, so the
    # (x1, y1, x2, y2) phase is fixed per lane: even lanes -> x, odd -> y.
    lane = lax.broadcasted_iota(jnp.int32, boxes.shape, dimension=boxes.ndim - 1)
    hi = jnp.where((lane & 1) == 0,
                   jnp.asarray(w_max, boxes.dtype),
                   jnp.asarray(h_max, boxes.dtype))
    lo = jnp.asarray(0, boxes.dtype)
    out_ref[...] = jnp.minimum(jnp.maximum(boxes, lo), hi)


def clip_boxes(batch_imgs, batch_boxes):
    """Pallas implementation of ClipBoxes.forward.

    batch_imgs:  [B, C, H, W]  (only the static H, W are used)
    batch_boxes: [B, N, 4]     boxes (x1, y1, x2, y2); returns clipped boxes,
                               same shape/dtype (new array, not in-place).
    """
    h, w = batch_imgs.shape[2], batch_imgs.shape[3]
    b, n, c4 = batch_boxes.shape
    assert c4 == 4, "last dim of boxes must be 4 (x1, y1, x2, y2)"
    dtype = batch_boxes.dtype
    itemsize = jnp.dtype(dtype).itemsize

    if b == 0 or n == 0:
        return batch_boxes

    k = n * 4
    boxes2d = batch_boxes.reshape(b, k)          # free, contiguous reshape

    block_bytes, vmem_limit = _target_block_bytes()
    target_elems = max(block_bytes // itemsize, _LANE)

    # --- sublane (batch) blocking ------------------------------------------
    if b <= _SUBLANE_CAP:
        bm = b                   # full dim: legal block size for any dtype
    else:
        bm = _SUBLANE_CAP        # multiple of 8/16/32; ragged tail is masked
    gm = pl.cdiv(b, bm)

    # --- lane (N*4) blocking -------------------------------------------------
    if k <= 2 * _LANE:
        bk = k                   # tiny: single full-dim lane block
    else:
        cap = max(_LANE, _round_down(target_elems // bm, _LANE))
        # Keep at least 2 lane blocks so v7x's two TensorCores both get work.
        half = max(_LANE, _round_down(k // 2, _LANE))
        bk = min(cap, half)      # multiple of 128 -> lane-dense stores,
        #                          ragged last block handled by Pallas masking
    gk = pl.cdiv(k, bk)

    total = b * k
    kernel = functools.partial(_clip_boxes_kernel, w_max=w - 1, h_max=h - 1)

    out2d = pl.pallas_call(
        kernel,
        out_shape=jax.ShapeDtypeStruct((b, k), dtype),
        grid_spec=pltpu.PrefetchScalarGridSpec(
            num_scalar_prefetch=0,
            grid=(gm, gk),
            in_specs=[pl.BlockSpec((bm, bk), lambda i, j: (i, j))],
            out_specs=pl.BlockSpec((bm, bk), lambda i, j: (i, j)),
        ),
        compiler_params=pltpu.CompilerParams(
            dimension_semantics=("parallel", "parallel"),
            vmem_limit_bytes=vmem_limit,
        ),
        cost_estimate=pl.CostEstimate(
            flops=2 * total,
            bytes_accessed=2 * total * itemsize,
            transcendentals=0,
        ),
    )(boxes2d)

    return out2d.reshape(b, n, 4)


def _reference_clip_boxes(batch_imgs, batch_boxes):
    h, w = batch_imgs.shape[2], batch_imgs.shape[3]
    boxes = jnp.maximum(batch_boxes, 0)
    xs = jnp.minimum(boxes[..., 0::2], w - 1)
    ys = jnp.minimum(boxes[..., 1::2], h - 1)
    out = jnp.stack([xs[..., 0], ys[..., 0], xs[..., 1], ys[..., 1]], axis=-1)
    return out.astype(batch_boxes.dtype)


if __name__ == "__main__":
    key = jax.random.PRNGKey(0)
    k_img, k_box = jax.random.split(key)

    B, C, H, W = 2, 4, 16, 16
    N = 8  # boxes per image

    batch_imgs = jax.random.normal(k_img, (B, C, H, W), dtype=jnp.float32)
    # Boxes with coords < 0 and > W-1 / H-1 to exercise both clamps.
    batch_boxes = jax.random.uniform(
        k_box, (B, N, 4), dtype=jnp.float32, minval=-10.0, maxval=30.0
    )

    out = clip_boxes(batch_imgs, batch_boxes)
    out = jax.block_until_ready(out)

    ref = _reference_clip_boxes(batch_imgs, batch_boxes)
    assert out.shape == batch_boxes.shape
    assert out.dtype == batch_boxes.dtype
    assert jnp.allclose(out, ref), "Pallas output does not match reference"

    print("KERNEL_OK")
</pallas_src>

<mosaic_0001>
module attributes {stable_mosaic.version = 11 : i64} {
  func.func @_clip_boxes_kernel(%arg0: i32, %arg1: i32, %arg2: memref<2x32xf32, #tpu.memory_space<vmem>>, %arg3: memref<2x32xf32, #tpu.memory_space<vmem>>) attributes {dimension_semantics = [#tpu.dimension_semantics<parallel>, #tpu.dimension_semantics<parallel>], iteration_bounds = array<i64: 1, 1>, scalar_prefetch = 0 : i64, scratch_operands = 0 : i64, tpu.core_type = #tpu.core_type<tc>, window_params = [{transform_indices = @transform_0, window_bounds = array<i64: 2, 32>}, {transform_indices = @transform_1, window_bounds = array<i64: 2, 32>}]} {
    %c0 = arith.constant 0 : index
    %c0_0 = arith.constant 0 : index
    %0 = vector.load %arg2[%c0, %c0_0] : memref<2x32xf32, #tpu.memory_space<vmem>>, vector<2x32xf32>
    %1 = tpu.iota {dimensions = array<i32: 1>} : vector<2x32xi32>
    %c1_i32 = arith.constant 1 : i32
    %2 = vector.broadcast %c1_i32 : i32 to vector<2x32xi32>
    %3 = arith.andi %1, %2 : vector<2x32xi32>
    %c0_i32 = arith.constant 0 : i32
    %4 = vector.broadcast %c0_i32 : i32 to vector<2x32xi32>
    %5 = arith.cmpi eq, %3, %4 : vector<2x32xi32>
    %cst = arith.constant 1.500000e+01 : f32
    %cst_1 = arith.constant 1.500000e+01 : f32
    %6 = vector.broadcast %cst : f32 to vector<2x32xf32>
    %7 = vector.broadcast %cst_1 : f32 to vector<2x32xf32>
    %8 = arith.select %5, %6, %7 : vector<2x32xi1>, vector<2x32xf32>
    %cst_2 = arith.constant 0.000000e+00 : f32
    %9 = vector.broadcast %cst_2 : f32 to vector<2x32xf32>
    %10 = arith.maximumf %0, %9 : vector<2x32xf32>
    %11 = arith.minimumf %10, %8 : vector<2x32xf32>
    %c0_3 = arith.constant 0 : index
    %c0_4 = arith.constant 0 : index
    %12 = vector.load %arg3[%c0_3, %c0_4] : memref<2x32xf32, #tpu.memory_space<vmem>>, vector<2x32xf32>
    tpu.vector_store %arg3[%c0_3, %c0_4], %11 {strides = array<i32>} : memref<2x32xf32, #tpu.memory_space<vmem>>, vector<2x32xf32>,
    return
  }
  func.func @transform_0(%arg0: i32, %arg1: i32) -> (i32, i32) {
    %c0_i32 = arith.constant 0 : i32
    return %arg0, %arg1 : i32, i32
  }
  func.func @transform_1(%arg0: i32, %arg1: i32) -> (i32, i32) {
    %c0_i32 = arith.constant 0 : i32
    return %arg0, %arg1 : i32, i32
  }
}

</mosaic_0001>

<llo_original>
// kernel: tpu_custom_call.1
$region0: #{tpu_custom_call.1}
  #allocation0 [shape = 'u32[]', space=smem, size = 0x4, offset = 0x4, fixed_abs, tag = 'smem constant byte address 0x4 - core index']
  #allocation1 [shape = 'u32[144,128]{1,0:T(1,128)}', space=vmem, size = 0x12000, scoped, tag = 'internal scratch']
  %s0 = inlined_call_operand.hbm [shape: f32[2,32], index: 0, kind: input, shape index: {}]
  %s1 = inlined_call_operand.hbm [shape: f32[2,32], index: 1, kind: output, shape index: {}]
  %s2 = sld [smem:[#allocation0]]
  $region18: #{tpu_custom_call.1} parent=0
    _
  %s4 = ssub.s32 1, %s2
  %s5 = scalar_select 0, %s4, %s2
  $region1: #{tpu_custom_call.1} parent=0
    #allocation2 [shape = 'u8[1024]{0}', space=vmem, size = 0x400, scoped, tag = 'input window, operand 0, single buffered']
    #allocation3 [shape = 's32[1]{0}', space=sflag, size = 0x4, scoped, tag = 'scoped memory for tpu_custom_call.1']
    #allocation4 [shape = 's32[1]{0}', space=sflag, size = 0x4, scoped, tag = 'scoped memory for tpu_custom_call.1']
    #allocation5 [shape = 'u8[1024]{0}', space=vmem, size = 0x400, scoped, tag = 'output window, operand 0, single buffered']
    %6 = vsyncpa [#allocation3], 0
    %7 = vsyncpa [#allocation4], 0
    // Predicated region
    $region2: #{tpu_custom_call.1} parent=1 // pred_check
      _
    $region3: #{tpu_custom_call.1} parent=1 // pred_check_branch
      %9 = sbr.rel (0) target = $region5
    $region4: #{tpu_custom_call.1} parent=1 // pred_region
      %s11 = ssub.s32 32, 32
      %12 = vsyncadd [#allocation3], %s11
      %s14 = sshll.u32 [#allocation2], 4
      %s15 = int_to_ptr.vmem [resolvable:$true] %s14
      %17 = dma.hbm_to_vmem [thread:$0]  %s0, 32, %s15, [#allocation3]
    $region5: #{tpu_custom_call.1} parent=1 // pred_fallthru
      _
    // Predicated region
    $region6: #{tpu_custom_call.1} parent=1 // pred_check
      _
    $region7: #{tpu_custom_call.1} parent=1 // pred_check_branch
      %19 = sbr.rel (0) target = $region9
    $region8: #{tpu_custom_call.1} parent=1 // pred_region
      %20 = dma.done [#allocation3], 32
    $region9: #{tpu_custom_call.1} parent=1 // pred_fallthru
      _
    %v21 = vld [vmem:[#allocation2] sm:$0x3]
    %v22 = vmax.f32 %v21, 0.0
    %v23 = vmin.f32 %v22, 15.0
    %vm24 = vcmask 254976
    %25 = vst.msk [vmem:[#allocation5] sm:$0x3] %vm24, %v23
    // Predicated region
    $region10: #{tpu_custom_call.1} parent=1 // pred_check
      _
    $region11: #{tpu_custom_call.1} parent=1 // pred_check_branch
      %27 = sbr.rel (0) target = $region13
    $region12: #{tpu_custom_call.1} parent=1 // pred_region
      %s29 = ssub.s32 32, 32
      %30 = vsyncadd [#allocation4], %s29
      %s32 = sshll.u32 [#allocation5], 4
      %s33 = int_to_ptr.vmem [resolvable:$true] %s32
      %35 = dma.vmem_to_hbm [thread:$0]  %s33, 32, %s1, [#allocation4]
    $region13: #{tpu_custom_call.1} parent=1 // pred_fallthru
      _
    // Predicated region
    $region14: #{tpu_custom_call.1} parent=1 // pred_check
      _
    $region15: #{tpu_custom_call.1} parent=1 // pred_check_branch
      %37 = sbr.rel (0) target = $region17
    $region16: #{tpu_custom_call.1} parent=1 // pred_region
      %38 = dma.done [#allocation4], 32
    $region17: #{tpu_custom_call.1} parent=1 // pred_fallthru
      _
    %39 = vsyncpa [#allocation3], 1
    %40 = vsyncpa [#allocation4], 1

</llo_original>
